<compile_context>
chip_gen: v7x
topology: tpu7x:2x2x1
jax: 0.10.0
libtpu: 0.0.40
codegen_flags: <defaults>
</compile_context>

<pallas_src>
import functools

import jax
import jax.numpy as jnp
from jax import lax
from jax.experimental import pallas as pl
from jax.experimental.pallas import tpu as pltpu


def _round_up(x, m):
    return -(-x // m) * m


def splitted_kernel(xs_hbm, wmask_ref, w_ref, scale_ref, shift_ref, out_ref,
                    buf, xcol, sem, *,
                    kh, kw, width, tm, halo_l, cin, cout, coutp, n_branches):
    """One grid step = one TM-wide lane slab of one image.

    xs_hbm   : (N, Cin, L)      bf16 guard-row store, left in HBM (pl.ANY)
    wmask_ref: (KW, TM)         bf16 W-boundary masks (1/0) for this slab
    w_ref    : (B*Coutp, T*Cin) bf16 packed per-branch conv weights (resident)
    scale_ref: (B*Coutp, 1)     f32 folded BN scale
    shift_ref: (B*Coutp, 1)     f32 folded conv-bias + BN shift
    out_ref  : (1, Cout, TM)    f32 NCHW-contiguous output block
    buf      : (Cin, SLAB)      VMEM scratch, haloed input slab
    xcol     : (T*Cin, TM)      VMEM scratch, in-kernel im2col matrix
    """
    j = pl.program_id(0)          # spatial slab index within the image
    ni = pl.program_id(1)         # image index
    slab = buf.shape[1]
    pw = (kw - 1) // 2

    # Fetch the haloed (Cin, SLAB) window of image `ni` straight from HBM.
    start = pl.multiple_of(j * tm, 128)
    cp = pltpu.make_async_copy(xs_hbm.at[ni, :, pl.ds(start, slab)], buf, sem)
    cp.start()
    cp.wait()
    # TODO(synk): double-buffer this input DMA across grid steps; the priming
    # step needs care under megacore 'parallel' grid splitting, so each step is
    # kept self-contained (sync copy) here.

    # In-kernel im2col: every tap is a constant lane-offset slice of the slab.
    # The H boundary is handled by the zero guard rows baked into the store;
    # only off-image W columns need masking.
    for dh in range(kh):
        for dw in range(kw):
            t = dh * kw + dw
            off = halo_l + dh * width + (dw - pw)
            tap = buf[:, off:off + tm]
            if dw != pw:
                tap = tap * wmask_ref[dw:dw + 1, :]
            xcol[t * cin:(t + 1) * cin, :] = tap

    # One deep-K MXU matmul: all taps and all branches at once, f32 accumulate.
    y = jnp.dot(w_ref[...], xcol[...], preferred_element_type=jnp.float32)
    # Fused conv-bias + eval-mode BatchNorm + ReLU.
    y = jnp.maximum(y * scale_ref[...] + shift_ref[...], 0.0)
    # Combine(op='+') over branches: 8-sublane-aligned groups -> pure VPU adds.
    total = y[0:coutp, :]
    for bi in range(1, n_branches):
        total = total + y[bi * coutp:(bi + 1) * coutp, :]
    out_ref[0, :, :] = total[:cout, :].astype(out_ref.dtype)


@functools.partial(jax.jit, static_argnames=("kh", "kw"))
def splitted_forward(x_nchw, w, scale, shift, *, kh=3, kw=3):
    """x_nchw: (N, Cin, H, W); w: (B, Cout, Cin, KH, KW) (PyTorch conv layout);
    scale/shift: (B, Cout) folded eval-mode BN params.  Returns NCHW f32.

    Precision policy: inputs/weights are streamed as bf16 (inference policy);
    accumulation and the scale/shift/ReLU epilogue are f32.
    Only stride=1, dilation=1, padding='same' (the module's instantiation).
    """
    n, cin, h, wd = x_nchw.shape
    n_branches, cout = w.shape[0], w.shape[1]
    # '+'-combine requires every branch to have identical output channels; the
    # stacked weight tensor enforces it, but fail loudly on a mismatch anyway.
    assert w.shape == (n_branches, cout, cin, kh, kw), w.shape
    assert scale.shape == (n_branches, cout) and shift.shape == (n_branches, cout)

    ph, pw = (kh - 1) // 2, (kw - 1) // 2
    t = kh * kw
    coutp = _round_up(cout, 8)            # sublane-aligned branch groups
    hw = h * wd
    hw_pad = _round_up(hw, 128)

    # Slab (lane-tile) size: biggest multiple of 128 dividing hw_pad, <= 1024.
    # Not shrunk just to create extra grid steps on single-TC parts; the image
    # axis already provides >= N steps for v7x megacore.
    tm = 128
    for cand in range(1024, 127, -128):
        if hw_pad % cand == 0:
            tm = cand
            break
    halo_l = 128
    halo_r = _round_up((kh - 1) * wd + kw, 128)
    slab = halo_l + tm + halo_r

    # Input store (N, Cin, L) bf16: per image = [halo_l pad | ph zero guard
    # rows | H rows of W | ph zero guard rows | zero tail].  Every tap then is
    # a constant lane shift of the slab; only the W boundary needs a mask.
    s_core = max(_round_up((h + 2 * ph) * wd, 128), hw_pad)
    l_img = halo_l + s_core + halo_r
    xg = jnp.pad(x_nchw.astype(jnp.bfloat16),
                 ((0, 0), (0, 0), (ph, ph), (0, 0)))
    xg = xg.reshape(n, cin, (h + 2 * ph) * wd)
    xs = jnp.pad(xg, ((0, 0), (0, 0),
                      (halo_l, l_img - halo_l - (h + 2 * ph) * wd)))

    # W-boundary masks, one row per kernel-column offset dw.
    w_col = jnp.arange(hw_pad, dtype=jnp.int32) % wd
    rows = []
    for dw in range(kw):
        lo, hi = pw - dw, wd - 1 + pw - dw
        rows.append(((w_col >= lo) & (w_col <= hi)).astype(jnp.bfloat16))
    wmask = jnp.stack(rows, axis=0)                       # (KW, hw_pad)

    # Packed weights / folded BN params; each branch's Cout padded to 8 rows.
    wp = jnp.transpose(w, (0, 1, 3, 4, 2)).reshape(n_branches, cout, t * cin)
    wp = jnp.pad(wp, ((0, 0), (0, coutp - cout), (0, 0)))
    w_mat = wp.reshape(n_branches * coutp, t * cin).astype(jnp.bfloat16)
    scale2 = jnp.pad(scale, ((0, 0), (0, coutp - cout))
                     ).reshape(n_branches * coutp, 1).astype(jnp.float32)
    shift2 = jnp.pad(shift, ((0, 0), (0, coutp - cout))
                     ).reshape(n_branches * coutp, 1).astype(jnp.float32)

    grid = (hw_pad // tm, n)

    kernel = functools.partial(
        splitted_kernel, kh=kh, kw=kw, width=wd, tm=tm, halo_l=halo_l,
        cin=cin, cout=cout, coutp=coutp, n_branches=n_branches)

    # VMEM budget: double-buffered streamed blocks + resident weights + scratch.
    vmem_bytes = (2 * (kw * tm * 2 + cout * tm * 4)
                  + n_branches * coutp * (t * cin * 2 + 8)
                  + cin * slab * 2 + t * cin * tm * 2)
    cparams = dict(dimension_semantics=("parallel", "parallel"))
    if vmem_bytes > 12 * 1024 * 1024:
        cparams["vmem_limit_bytes"] = int(1.5 * vmem_bytes)
    # TODO(synk): for very large Cin the resident (T*Cin, TM) tap matrix should
    # be split along K with an f32 accumulator grid axis (v7x has 64 MiB VMEM).

    out_flat = pl.pallas_call(
        kernel,
        out_shape=jax.ShapeDtypeStruct((n, cout, hw_pad), jnp.float32),
        grid_spec=pltpu.PrefetchScalarGridSpec(
            num_scalar_prefetch=0,
            grid=grid,
            in_specs=[
                pl.BlockSpec(memory_space=pl.ANY),                       # xs, HBM
                pl.BlockSpec((kw, tm), lambda j, ni: (0, j)),            # wmask
                pl.BlockSpec((n_branches * coutp, t * cin),
                             lambda j, ni: (0, 0)),                      # weights
                pl.BlockSpec((n_branches * coutp, 1), lambda j, ni: (0, 0)),
                pl.BlockSpec((n_branches * coutp, 1), lambda j, ni: (0, 0)),
            ],
            out_specs=pl.BlockSpec((1, cout, tm), lambda j, ni: (ni, 0, j)),
            scratch_shapes=[
                pltpu.VMEM((cin, slab), jnp.bfloat16),     # haloed input slab
                pltpu.VMEM((t * cin, tm), jnp.bfloat16),   # im2col matrix
                pltpu.SemaphoreType.DMA,
            ],
        ),
        compiler_params=pltpu.CompilerParams(**cparams),
    )(xs, wmask, w_mat, scale2, shift2)

    # NCHW comes out directly: (N, Cout, H*W) -> (N, Cout, H, W) is a free
    # reshape (no transpose pass over the output).
    if hw_pad != hw:
        out_flat = out_flat[:, :, :hw]   # TODO(synk): extra slice pass when H*W % 128 != 0
    return out_flat.reshape(n, cout, h, wd)


def reference_forward(x_nchw, w, bias, gamma, beta, mean, var, eps=1e-5):
    """Pure-JAX reference for the same Splitted forward (eval-mode BatchNorm)."""
    n_branches = w.shape[0]
    x = jnp.transpose(x_nchw, (0, 2, 3, 1))  # NHWC
    total = None
    for bi in range(n_branches):
        k = jnp.transpose(w[bi], (2, 3, 1, 0))  # (KH, KW, Cin, Cout)
        y = lax.conv_general_dilated(
            x, k, window_strides=(1, 1), padding="SAME",
            dimension_numbers=("NHWC", "HWIO", "NHWC"),
        )
        y = y + bias[bi]
        y = (y - mean[bi]) / jnp.sqrt(var[bi] + eps) * gamma[bi] + beta[bi]
        y = jnp.maximum(y, 0.0)
        total = y if total is None else total + y
    return jnp.transpose(total, (0, 3, 1, 2))


if __name__ == "__main__":
    # Small shapes consistent with the module: batch=2, channels=4, spatial 16x16,
    # other=3 branches, 3x3 conv with filters='same' (so '+' combine is valid).
    N, C, H, W = 2, 4, 16, 16
    B, KH, KW = 3, 3, 3
    Cout = C
    eps = 1e-5

    key = jax.random.PRNGKey(0)
    kx, kw_, kb, kg, kbeta = jax.random.split(key, 5)

    x = jax.random.normal(kx, (N, C, H, W), jnp.float32)
    w = 0.1 * jax.random.normal(kw_, (B, Cout, C, KH, KW), jnp.float32)
    # Feed bf16-representable values so the f32 reference and the bf16-stream
    # kernel see numerically identical inputs (keeps the check tight).
    x = x.astype(jnp.bfloat16).astype(jnp.float32)
    w = w.astype(jnp.bfloat16).astype(jnp.float32)

    bias = 0.1 * jax.random.normal(kb, (B, Cout), jnp.float32)
    gamma = 1.0 + 0.1 * jax.random.normal(kg, (B, Cout), jnp.float32)
    beta = 0.1 * jax.random.normal(kbeta, (B, Cout), jnp.float32)
    # BatchNorm assumed in eval mode with default running stats.
    run_mean = jnp.zeros((B, Cout), jnp.float32)
    run_var = jnp.ones((B, Cout), jnp.float32)

    # Fold conv bias + BN into per-channel scale/shift for the kernel.
    scale = gamma / jnp.sqrt(run_var + eps)
    shift = (bias - run_mean) * scale + beta

    out = splitted_forward(x, w, scale, shift)
    out = jax.block_until_ready(out)

    ref = reference_forward(x, w, bias, gamma, beta, run_mean, run_var, eps)
    ref = jax.block_until_ready(ref)

    assert out.shape == (N, Cout, H, W)
    err = jnp.max(jnp.abs(out - ref))
    assert jnp.allclose(out, ref, atol=2e-3, rtol=2e-3), f"max abs err = {err}"
    print("KERNEL_OK")
</pallas_src>

<mosaic_0001>
module attributes {stable_mosaic.version = 11 : i64} {
  func.func @splitted_kernel(%arg0: i32, %arg1: i32, %arg2: memref<2x4x640xbf16, #tpu.memory_space<any>>, %arg3: memref<3x256xbf16, #tpu.memory_space<vmem>>, %arg4: memref<24x36xbf16, #tpu.memory_space<vmem>>, %arg5: memref<24x1xf32, #tpu.memory_space<vmem>>, %arg6: memref<24x1xf32, #tpu.memory_space<vmem>>, %arg7: memref<1x4x256xf32, #tpu.memory_space<vmem>>, %arg8: memref<4x512xbf16, #tpu.memory_space<vmem>>, %arg9: memref<36x256xbf16, #tpu.memory_space<vmem>>, %arg10: memref<!tpu.dma_semaphore, #tpu.memory_space<semaphore_mem>>) attributes {dimension_semantics = [#tpu.dimension_semantics<parallel>, #tpu.dimension_semantics<parallel>], iteration_bounds = array<i64: 1, 2>, scalar_prefetch = 0 : i64, scratch_operands = 3 : i64, tpu.core_type = #tpu.core_type<tc>, window_params = [{}, {transform_indices = @transform_1, window_bounds = array<i64: 3, 256>}, {pipeline_mode = #tpu.pipeline_mode<synchronous>, transform_indices = @transform_2, window_bounds = array<i64: 24, 36>}, {pipeline_mode = #tpu.pipeline_mode<synchronous>, transform_indices = @transform_3, window_bounds = array<i64: 24, 1>}, {pipeline_mode = #tpu.pipeline_mode<synchronous>, transform_indices = @transform_4, window_bounds = array<i64: 24, 1>}, {transform_indices = @transform_5, window_bounds = array<i64: 1, 4, 256>}]} {
    %c256_i32 = arith.constant 256 : i32
    %0 = arith.muli %arg0, %c256_i32 : i32
    %1 = tpu.assume_multiple %0, 128 : i32
    %c0_i32 = arith.constant 0 : i32
    %2 = tpu.memref_slice %arg2[%arg1, %c0_i32, %1] : memref<2x4x640xbf16, #tpu.memory_space<any>> -> memref<1x4x512xbf16, #tpu.memory_space<any>>
    %3 = tpu.memref_squeeze %2 : memref<1x4x512xbf16, #tpu.memory_space<any>> -> memref<4x512xbf16, #tpu.memory_space<any>>
    tpu.enqueue_dma source(%3 : memref<4x512xbf16, #tpu.memory_space<any>>) target(%arg8 : memref<4x512xbf16, #tpu.memory_space<vmem>>) target_semaphore(%arg10 : memref<!tpu.dma_semaphore, #tpu.memory_space<semaphore_mem>>)
    %c0_i32_0 = arith.constant 0 : i32
    %4 = tpu.memref_slice %arg2[%arg1, %c0_i32_0, %1] : memref<2x4x640xbf16, #tpu.memory_space<any>> -> memref<1x4x512xbf16, #tpu.memory_space<any>>
    %5 = tpu.memref_squeeze %4 : memref<1x4x512xbf16, #tpu.memory_space<any>> -> memref<4x512xbf16, #tpu.memory_space<any>>
    tpu.wait_dma2 semaphore(%arg10 : memref<!tpu.dma_semaphore, #tpu.memory_space<semaphore_mem>>) src(%5 : memref<4x512xbf16, #tpu.memory_space<any>>) dst(%arg8 : memref<4x512xbf16, #tpu.memory_space<vmem>>)
    %c0 = arith.constant 0 : index
    %c127 = arith.constant 127 : index
    %6 = vector.load %arg8[%c0, %c127] : memref<4x512xbf16, #tpu.memory_space<vmem>>, vector<4x256xbf16>
    %c0_1 = arith.constant 0 : index
    %c0_2 = arith.constant 0 : index
    %7 = vector.load %arg3[%c0_1, %c0_2] : memref<3x256xbf16, #tpu.memory_space<vmem>>, vector<1x256xbf16>
    %8 = vector.broadcast %7 : vector<1x256xbf16> to vector<4x256xbf16>
    %9 = arith.mulf %6, %8 : vector<4x256xbf16>
    %c0_3 = arith.constant 0 : index
    %c0_4 = arith.constant 0 : index
    %10 = vector.load %arg9[%c0_3, %c0_4] : memref<36x256xbf16, #tpu.memory_space<vmem>>, vector<4x256xbf16>
    tpu.vector_store %arg9[%c0_3, %c0_4], %9 {strides = array<i32>} : memref<36x256xbf16, #tpu.memory_space<vmem>>, vector<4x256xbf16>,
    %c0_5 = arith.constant 0 : index
    %c128 = arith.constant 128 : index
    %11 = vector.load %arg8[%c0_5, %c128] : memref<4x512xbf16, #tpu.memory_space<vmem>>, vector<4x256xbf16>
    %c4 = arith.constant 4 : index
    %c0_6 = arith.constant 0 : index
    %12 = vector.load %arg9[%c4, %c0_6] : memref<36x256xbf16, #tpu.memory_space<vmem>>, vector<4x256xbf16>
    tpu.vector_store %arg9[%c4, %c0_6], %11 {strides = array<i32>} : memref<36x256xbf16, #tpu.memory_space<vmem>>, vector<4x256xbf16>,
    %c0_7 = arith.constant 0 : index
    %c129 = arith.constant 129 : index
    %13 = vector.load %arg8[%c0_7, %c129] : memref<4x512xbf16, #tpu.memory_space<vmem>>, vector<4x256xbf16>
    %c2 = arith.constant 2 : index
    %c0_8 = arith.constant 0 : index
    %14 = vector.load %arg3[%c2, %c0_8] : memref<3x256xbf16, #tpu.memory_space<vmem>>, vector<1x256xbf16>
    %15 = vector.broadcast %14 : vector<1x256xbf16> to vector<4x256xbf16>
    %16 = arith.mulf %13, %15 : vector<4x256xbf16>
    %c8 = arith.constant 8 : index
    %c0_9 = arith.constant 0 : index
    %17 = vector.load %arg9[%c8, %c0_9] : memref<36x256xbf16, #tpu.memory_space<vmem>>, vector<4x256xbf16>
    tpu.vector_store %arg9[%c8, %c0_9], %16 {strides = array<i32>} : memref<36x256xbf16, #tpu.memory_space<vmem>>, vector<4x256xbf16>,
    %c0_10 = arith.constant 0 : index
    %c143 = arith.constant 143 : index
    %18 = vector.load %arg8[%c0_10, %c143] : memref<4x512xbf16, #tpu.memory_space<vmem>>, vector<4x256xbf16>
    %c0_11 = arith.constant 0 : index
    %c0_12 = arith.constant 0 : index
    %19 = vector.load %arg3[%c0_11, %c0_12] : memref<3x256xbf16, #tpu.memory_space<vmem>>, vector<1x256xbf16>
    %20 = vector.broadcast %19 : vector<1x256xbf16> to vector<4x256xbf16>
    %21 = arith.mulf %18, %20 : vector<4x256xbf16>
    %c12 = arith.constant 12 : index
    %c0_13 = arith.constant 0 : index
    %22 = vector.load %arg9[%c12, %c0_13] : memref<36x256xbf16, #tpu.memory_space<vmem>>, vector<4x256xbf16>
    tpu.vector_store %arg9[%c12, %c0_13], %21 {strides = array<i32>} : memref<36x256xbf16, #tpu.memory_space<vmem>>, vector<4x256xbf16>,
    %c0_14 = arith.constant 0 : index
    %c144 = arith.constant 144 : index
    %23 = vector.load %arg8[%c0_14, %c144] : memref<4x512xbf16, #tpu.memory_space<vmem>>, vector<4x256xbf16>
    %c16 = arith.constant 16 : index
    %c0_15 = arith.constant 0 : index
    %24 = vector.load %arg9[%c16, %c0_15] : memref<36x256xbf16, #tpu.memory_space<vmem>>, vector<4x256xbf16>
    tpu.vector_store %arg9[%c16, %c0_15], %23 {strides = array<i32>} : memref<36x256xbf16, #tpu.memory_space<vmem>>, vector<4x256xbf16>,
    %c0_16 = arith.constant 0 : index
    %c145 = arith.constant 145 : index
    %25 = vector.load %arg8[%c0_16, %c145] : memref<4x512xbf16, #tpu.memory_space<vmem>>, vector<4x256xbf16>
    %c2_17 = arith.constant 2 : index
    %c0_18 = arith.constant 0 : index
    %26 = vector.load %arg3[%c2_17, %c0_18] : memref<3x256xbf16, #tpu.memory_space<vmem>>, vector<1x256xbf16>
    %27 = vector.broadcast %26 : vector<1x256xbf16> to vector<4x256xbf16>
    %28 = arith.mulf %25, %27 : vector<4x256xbf16>
    %c20 = arith.constant 20 : index
    %c0_19 = arith.constant 0 : index
    %29 = vector.load %arg9[%c20, %c0_19] : memref<36x256xbf16, #tpu.memory_space<vmem>>, vector<4x256xbf16>
    tpu.vector_store %arg9[%c20, %c0_19], %28 {strides = array<i32>} : memref<36x256xbf16, #tpu.memory_space<vmem>>, vector<4x256xbf16>,
    %c0_20 = arith.constant 0 : index
    %c159 = arith.constant 159 : index
    %30 = vector.load %arg8[%c0_20, %c159] : memref<4x512xbf16, #tpu.memory_space<vmem>>, vector<4x256xbf16>
    %c0_21 = arith.constant 0 : index
    %c0_22 = arith.constant 0 : index
    %31 = vector.load %arg3[%c0_21, %c0_22] : memref<3x256xbf16, #tpu.memory_space<vmem>>, vector<1x256xbf16>
    %32 = vector.broadcast %31 : vector<1x256xbf16> to vector<4x256xbf16>
    %33 = arith.mulf %30, %32 : vector<4x256xbf16>
    %c24 = arith.constant 24 : index
    %c0_23 = arith.constant 0 : index
    %34 = vector.load %arg9[%c24, %c0_23] : memref<36x256xbf16, #tpu.memory_space<vmem>>, vector<4x256xbf16>
    tpu.vector_store %arg9[%c24, %c0_23], %33 {strides = array<i32>} : memref<36x256xbf16, #tpu.memory_space<vmem>>, vector<4x256xbf16>,
    %c0_24 = arith.constant 0 : index
    %c160 = arith.constant 160 : index
    %35 = vector.load %arg8[%c0_24, %c160] : memref<4x512xbf16, #tpu.memory_space<vmem>>, vector<4x256xbf16>
    %c28 = arith.constant 28 : index
    %c0_25 = arith.constant 0 : index
    %36 = vector.load %arg9[%c28, %c0_25] : memref<36x256xbf16, #tpu.memory_space<vmem>>, vector<4x256xbf16>
    tpu.vector_store %arg9[%c28, %c0_25], %35 {strides = array<i32>} : memref<36x256xbf16, #tpu.memory_space<vmem>>, vector<4x256xbf16>,
    %c0_26 = arith.constant 0 : index
    %c161 = arith.constant 161 : index
    %37 = vector.load %arg8[%c0_26, %c161] : memref<4x512xbf16, #tpu.memory_space<vmem>>, vector<4x256xbf16>
    %c2_27 = arith.constant 2 : index
    %c0_28 = arith.constant 0 : index
    %38 = vector.load %arg3[%c2_27, %c0_28] : memref<3x256xbf16, #tpu.memory_space<vmem>>, vector<1x256xbf16>
    %39 = vector.broadcast %38 : vector<1x256xbf16> to vector<4x256xbf16>
    %40 = arith.mulf %37, %39 : vector<4x256xbf16>
    %c32 = arith.constant 32 : index
    %c0_29 = arith.constant 0 : index
    %41 = vector.load %arg9[%c32, %c0_29] : memref<36x256xbf16, #tpu.memory_space<vmem>>, vector<4x256xbf16>
    tpu.vector_store %arg9[%c32, %c0_29], %40 {strides = array<i32>} : memref<36x256xbf16, #tpu.memory_space<vmem>>, vector<4x256xbf16>,
    %c0_30 = arith.constant 0 : index
    %c0_31 = arith.constant 0 : index
    %42 = vector.load %arg4[%c0_30, %c0_31] : memref<24x36xbf16, #tpu.memory_space<vmem>>, vector<24x36xbf16>
    %c0_32 = arith.constant 0 : index
    %c0_33 = arith.constant 0 : index
    %43 = vector.load %arg9[%c0_32, %c0_33] : memref<36x256xbf16, #tpu.memory_space<vmem>>, vector<36x256xbf16>
    %cst = arith.constant dense<0.000000e+00> : vector<24x256xf32>
    %44 = tpu.matmul %42, %43, %cst {dimension_numbers = #tpu.dot_dimension_numbers<[1], [0], [0], [1], [0, 0, 1, 1], [], []>} : vector<24x36xbf16>, vector<36x256xbf16>, vector<24x256xf32> -> vector<24x256xf32>
    %c0_34 = arith.constant 0 : index
    %c0_35 = arith.constant 0 : index
    %45 = vector.load %arg5[%c0_34, %c0_35] : memref<24x1xf32, #tpu.memory_space<vmem>>, vector<24x1xf32>
    %46 = vector.broadcast %45 : vector<24x1xf32> to vector<24x256xf32>
    %47 = arith.mulf %44, %46 : vector<24x256xf32>
    %c0_36 = arith.constant 0 : index
    %c0_37 = arith.constant 0 : index
    %48 = vector.load %arg6[%c0_36, %c0_37] : memref<24x1xf32, #tpu.memory_space<vmem>>, vector<24x1xf32>
    %49 = vector.broadcast %48 : vector<24x1xf32> to vector<24x256xf32>
    %50 = arith.addf %47, %49 : vector<24x256xf32>
    %cst_38 = arith.constant 0.000000e+00 : f32
    %51 = vector.broadcast %cst_38 : f32 to vector<24x256xf32>
    %52 = arith.maximumf %50, %51 : vector<24x256xf32>
    %53 = vector.extract_strided_slice %52 {offsets = [0, 0], sizes = [8, 256], strides = [1, 1]} : vector<24x256xf32> to vector<8x256xf32>
    %54 = vector.extract_strided_slice %52 {offsets = [8, 0], sizes = [8, 256], strides = [1, 1]} : vector<24x256xf32> to vector<8x256xf32>
    %55 = arith.addf %53, %54 : vector<8x256xf32>
    %56 = vector.extract_strided_slice %52 {offsets = [16, 0], sizes = [8, 256], strides = [1, 1]} : vector<24x256xf32> to vector<8x256xf32>
    %57 = arith.addf %55, %56 : vector<8x256xf32>
    %58 = vector.extract_strided_slice %57 {offsets = [0, 0], sizes = [4, 256], strides = [1, 1]} : vector<8x256xf32> to vector<4x256xf32>
    %c0_39 = arith.constant 0 : index
    %c0_40 = arith.constant 0 : index
    %c0_41 = arith.constant 0 : index
    %59 = vector.load %arg7[%c0_39, %c0_40, %c0_41] : memref<1x4x256xf32, #tpu.memory_space<vmem>>, vector<1x4x256xf32>
    %60 = vector.shape_cast %59 : vector<1x4x256xf32> to vector<4x256xf32>
    %61 = vector.shape_cast %58 : vector<4x256xf32> to vector<1x4x256xf32>
    tpu.vector_store %arg7[%c0_39, %c0_40, %c0_41], %61 {strides = array<i32>} : memref<1x4x256xf32, #tpu.memory_space<vmem>>, vector<1x4x256xf32>,
    return
  }
  func.func @transform_1(%arg0: i32, %arg1: i32) -> (i32, i32) {
    %c0_i32 = arith.constant 0 : i32
    %c0_i32_0 = arith.constant 0 : i32
    return %c0_i32, %arg0 : i32, i32
  }
  func.func @transform_2(%arg0: i32, %arg1: i32) -> (i32, i32) {
    %c0_i32 = arith.constant 0 : i32
    %c0_i32_0 = arith.constant 0 : i32
    %c0_i32_1 = arith.constant 0 : i32
    return %c0_i32, %c0_i32_0 : i32, i32
  }
  func.func @transform_3(%arg0: i32, %arg1: i32) -> (i32, i32) {
    %c0_i32 = arith.constant 0 : i32
    %c0_i32_0 = arith.constant 0 : i32
    %c0_i32_1 = arith.constant 0 : i32
    return %c0_i32, %c0_i32_0 : i32, i32
  }
  func.func @transform_4(%arg0: i32, %arg1: i32) -> (i32, i32) {
    %c0_i32 = arith.constant 0 : i32
    %c0_i32_0 = arith.constant 0 : i32
    %c0_i32_1 = arith.constant 0 : i32
    return %c0_i32, %c0_i32_0 : i32, i32
  }
  func.func @transform_5(%arg0: i32, %arg1: i32) -> (i32, i32, i32) {
    %c0_i32 = arith.constant 0 : i32
    %c0_i32_0 = arith.constant 0 : i32
    return %arg1, %c0_i32, %arg0 : i32, i32, i32
  }
}

</mosaic_0001>

<llo_original>
// kernel: splitted_forward.1
$region0: #{splitted_forward.1}
  #allocation0 [shape = 'u32[]', space=smem, size = 0x4, offset = 0x4, fixed_abs, tag = 'smem constant byte address 0x4 - core index']
  #allocation1 [shape = 'u32[144,128]{1,0:T(1,128)}', space=vmem, size = 0x12000, scoped, tag = 'internal scratch']
  #allocation2 [shape = 'bf16[4,512]{1,0:T(4,128)(2,1)}', space=vmem, size = 0x1000, scoped, tag = 'scratch operand']
  #allocation3 [shape = 'bf16[36,256]{1,0:T(8,128)(2,1)}', space=vmem, size = 0x5000, scoped, tag = 'scratch operand']
  #allocation4 [shape = 's32[1]{0}', space=sflag, size = 0x4, scoped, tag = 'scratch operand']
  #allocation5 [shape = 's32[]', space=sflag, size = 0x4, offset = 0, fixed_abs, tag = 'sflag constant byte address 0x0 - dummy sync flag']
  %s0 = inlined_call_operand.vmem [shape: bf16[2,4,640], index: 0, kind: input, shape index: {}]
  %s1 = inlined_call_operand.vmem [shape: bf16[3,256], index: 1, kind: input, shape index: {}]
  %s2 = inlined_call_operand.vmem [shape: bf16[24,36], index: 2, kind: input, shape index: {}]
  %s3 = inlined_call_operand.vmem [shape: f32[24,1], index: 3, kind: input, shape index: {}]
  %s4 = inlined_call_operand.vmem [shape: f32[24,1], index: 4, kind: input, shape index: {}]
  %s5 = inlined_call_operand.vmem [shape: f32[2,4,256], index: 5, kind: output, shape index: {}]
  %s6 = sld [smem:[#allocation0]]
  $region83: #{splitted_forward.1} parent=0
    _
  %s8 = ssub.s32 1, %s6
  %s9 = scalar_select 0, %s8, %s6
  loop: start=0, step=1, limit=4
  $region2: #{splitted_forward.1} parent=0 // loop_pre_header
    _
  $region3: #{splitted_forward.1} parent=0 // loop_header
    %s11 = sphi 0, %s15
    %p12 = scmp.ge.s32.totalorder %s11, 4
    %s18 = sphi 0, %s30
    %s19 = sphi 0, %s26
    %s20 = sphi 0, %s18
    %s21 = sphi 0, %s19
    %s22 = sphi 0, %s20
    %s23 = sphi 0, %s21
    %s33 = sphi 0, %s35
    %s36 = sphi 0, %s33
    %s37 = sphi 0, %s36
    %s53 = sphi 0, %s37
    %s57 = sphi 0, %s57
    %s59 = sphi 0, %s57
    %s60 = sphi 0, %s59
    %s74 = sphi 0, %s60
    %s78 = sphi 0, %s78
    %s80 = sphi 0, %s78
    %s81 = sphi 0, %s80
    %s95 = sphi 0, %s81
    %s99 = sphi 0, %s99
    %s101 = sphi 0, %s99
    %s102 = sphi 0, %s101
    %s116 = sphi 0, %s102
    %s124 = sphi 0, %s126
    %s127 = sphi 0, %s124
    %s128 = sphi 0, %s127
    %s144 = sphi 0, %s128
  $region4: #{splitted_forward.1} parent=0 // loop_header_branch
    %14 = sbr.rel (%p12) target = $region8
  $region5: #{splitted_forward.1} parent=0 // loop_body
    %s16 = ssub.s32 %s11, 1
    %s17 = ssub.s32 %s11, 2
    %s24 = sadd.s32 1, %s19
    %p25 = scmp.ge.s32.totalorder %s24, 2
    %s26 = scalar_select %p25, 0, %s24
    %s27 = sadd.s32 1, %s18
    %s28 = scalar_select %p25, %s27, %s18
    %p29 = scmp.ge.s32.totalorder %s28, 1
    %s30 = scalar_select %p29, 0, %s28
    %s31 = ssub.s32 %s18, %s30
    %p32 = scmp.eq.s32.totalorder %s31, 0
    %s34 = sadd.s32 %s33, 1
    %s35 = scalar_select %p32, %s33, %s34
    %p38 = pneg %p32
    %p39 = scmp.eq.s32.totalorder %s11, 1
    %p40 = por %p38, %p39
    %p41 = scmp.ne.s32.totalorder %s33, %s36
    %p42 = scmp.eq.s32.totalorder %s11, 0
    %p43 = por %p41, %p42
    %p44 = scmp.ne.s32.totalorder %s33, %s36
    %p45 = scmp.eq.s32.totalorder %s16, 1
    %p46 = por %p44, %p45
    %p47 = scmp.ne.s32.totalorder %s36, %s37
    %p48 = scmp.eq.s32.totalorder %s16, 0
    %p49 = por %p47, %p48
    %p50 = scmp.ne.s32.totalorder %s36, %s37
    %p51 = scmp.eq.s32.totalorder %s17, 1
    %p52 = por %p50, %p51
    %p54 = scmp.ne.s32.totalorder %s37, %s53
    %p55 = scmp.eq.s32.totalorder %s17, 0
    %p56 = por %p54, %p55
    %s58 = sadd.s32 %s57, 1
    %p61 = scmp.eq.s32.totalorder %s11, 1
    %p62 = scmp.ne.s32.totalorder %s57, %s59
    %p63 = scmp.eq.s32.totalorder %s11, 0
    %p64 = por %p62, %p63
    %p65 = scmp.ne.s32.totalorder %s57, %s59
    %p66 = scmp.eq.s32.totalorder %s16, 1
    %p67 = por %p65, %p66
    %p68 = scmp.ne.s32.totalorder %s59, %s60
    %p69 = scmp.eq.s32.totalorder %s16, 0
    %p70 = por %p68, %p69
    %p71 = scmp.ne.s32.totalorder %s59, %s60
    %p72 = scmp.eq.s32.totalorder %s17, 1
    %p73 = por %p71, %p72
    %p75 = scmp.ne.s32.totalorder %s60, %s74
    %p76 = scmp.eq.s32.totalorder %s17, 0
    %p77 = por %p75, %p76
    %s79 = sadd.s32 %s78, 1
    %p82 = scmp.eq.s32.totalorder %s11, 1
    %p83 = scmp.ne.s32.totalorder %s78, %s80
    %p84 = scmp.eq.s32.totalorder %s11, 0
    %p85 = por %p83, %p84
    %p86 = scmp.ne.s32.totalorder %s78, %s80
    %p87 = scmp.eq.s32.totalorder %s16, 1
    %p88 = por %p86, %p87
    %p89 = scmp.ne.s32.totalorder %s80, %s81
    %p90 = scmp.eq.s32.totalorder %s16, 0
    %p91 = por %p89, %p90
    %p92 = scmp.ne.s32.totalorder %s80, %s81
    %p93 = scmp.eq.s32.totalorder %s17, 1
    %p94 = por %p92, %p93
    %p96 = scmp.ne.s32.totalorder %s81, %s95
    %p97 = scmp.eq.s32.totalorder %s17, 0
    %p98 = por %p96, %p97
    %s100 = sadd.s32 %s99, 1
    %p103 = scmp.eq.s32.totalorder %s11, 1
    %p104 = scmp.ne.s32.totalorder %s99, %s101
    %p105 = scmp.eq.s32.totalorder %s11, 0
    %p106 = por %p104, %p105
    %p107 = scmp.ne.s32.totalorder %s99, %s101
    %p108 = scmp.eq.s32.totalorder %s16, 1
    %p109 = por %p107, %p108
    %p110 = scmp.ne.s32.totalorder %s101, %s102
    %p111 = scmp.eq.s32.totalorder %s16, 0
    %p112 = por %p110, %p111
    %p113 = scmp.ne.s32.totalorder %s101, %s102
    %p114 = scmp.eq.s32.totalorder %s17, 1
    %p115 = por %p113, %p114
    %p117 = scmp.ne.s32.totalorder %s102, %s116
    %p118 = scmp.eq.s32.totalorder %s17, 0
    %p119 = por %p117, %p118
    %s120 = ssub.s32 %s19, %s26
    %s121 = ssub.s32 %s18, %s30
    %s122 = sor.u32 %s120, %s121
    %p123 = scmp.eq.s32.totalorder %s122, 0
    %s125 = sadd.s32 %s124, 1
    %s126 = scalar_select %p123, %s124, %s125
    %p129 = pneg %p123
    %p130 = scmp.eq.s32.totalorder %s11, 1
    %p131 = por %p129, %p130
    %p132 = scmp.ne.s32.totalorder %s124, %s127
    %p133 = scmp.eq.s32.totalorder %s11, 0
    %p134 = por %p132, %p133
    %p135 = scmp.ne.s32.totalorder %s124, %s127
    %p136 = scmp.eq.s32.totalorder %s16, 1
    %p137 = por %p135, %p136
    %p138 = scmp.ne.s32.totalorder %s127, %s128
    %p139 = scmp.eq.s32.totalorder %s16, 0
    %p140 = por %p138, %p139
    %p141 = scmp.ne.s32.totalorder %s127, %s128
    %p142 = scmp.eq.s32.totalorder %s17, 1
    %p143 = por %p141, %p142
    %p145 = scmp.ne.s32.totalorder %s128, %s144
    %p146 = scmp.eq.s32.totalorder %s17, 0
    %p147 = por %p145, %p146
    %p148 = scmp.le.s32.totalorder 1, %s11
    %p149 = scmp.lt.s32.totalorder %s11, 3
    %p150 = pnand %p148, %p149
    %p151 = pneg %p150
    // Predicated region
    $region9: #{splitted_forward.1} parent=5 // pred_check
      _
    $region10: #{splitted_forward.1} parent=5 // pred_check_branch
      %153 = sbr.rel (%p150) target = $region12
    $region11: #{splitted_forward.1} parent=5 // pred_region
      %s154 = ssub.s32 %s11, 1
      // Predicated region
      $region13: #{splitted_forward.1} parent=11 // pred_check
        %p155 = pneg %p49
      $region14: #{splitted_forward.1} parent=11 // pred_check_branch
        %157 = sbr.rel (%p155) target = $region16
      $region15: #{splitted_forward.1} parent=11 // pred_region
        %s158 = smul.u32 2, %s20
        %p159 = scmp.lt.s32.totalorder %s158, 1
        %s160 = scalar_select %p159, %s158, 1
        %s161 = smul.addr %s160, 2
        %s162 = scalar_lea.vmem %s1, %s161
        %s163 = smul.u32 2, %s20
      $region16: #{splitted_forward.1} parent=11 // pred_fallthru
        _
      // Predicated region
      $region17: #{splitted_forward.1} parent=11 // pred_check
        %p164 = pneg %p70
      $region18: #{splitted_forward.1} parent=11 // pred_check_branch
        %166 = sbr.rel (%p164) target = $region20
      $region19: #{splitted_forward.1} parent=11 // pred_region
        _
      $region20: #{splitted_forward.1} parent=11 // pred_fallthru
        _
      // Predicated region
      $region21: #{splitted_forward.1} parent=11 // pred_check
        %p167 = pneg %p91
      $region22: #{splitted_forward.1} parent=11 // pred_check_branch
        %169 = sbr.rel (%p167) target = $region24
      $region23: #{splitted_forward.1} parent=11 // pred_region
        _
      $region24: #{splitted_forward.1} parent=11 // pred_fallthru
        _
      // Predicated region
      $region25: #{splitted_forward.1} parent=11 // pred_check
        %p170 = pneg %p112
      $region26: #{splitted_forward.1} parent=11 // pred_check_branch
        %172 = sbr.rel (%p170) target = $region28
      $region27: #{splitted_forward.1} parent=11 // pred_region
        _
      $region28: #{splitted_forward.1} parent=11 // pred_fallthru
        _
    $region12: #{splitted_forward.1} parent=5 // pred_fallthru
      _
    %p173 = scmp.lt.s32.totalorder %s11, 2
    // Predicated region
    $region29: #{splitted_forward.1} parent=5 // pred_check
      %p174 = pneg %p173
    $region30: #{splitted_forward.1} parent=5 // pred_check_branch
      %176 = sbr.rel (%p174) target = $region32
    $region31: #{splitted_forward.1} parent=5 // pred_region
      _
    $region32: #{splitted_forward.1} parent=5 // pred_fallthru
      _
    %p177 = scmp.le.s32.totalorder 1, %s11
    %p178 = scmp.lt.s32.totalorder %s11, 3
    %p179 = pnand %p177, %p178
    %p180 = pneg %p179
    // Predicated region
    $region33: #{splitted_forward.1} parent=5 // pred_check
      _
    $region34: #{splitted_forward.1} parent=5 // pred_check_branch
      %182 = sbr.rel (%p179) target = $region36
    $region35: #{splitted_forward.1} parent=5 // pred_region
      %s183 = ssub.s32 %s11, 1
      %s184 = smul.u32 2, %s20
      %p185 = scmp.lt.s32.totalorder %s184, 1
      %s186 = scalar_select %p185, %s184, 1
      %s187 = smul.addr %s186, 2
      %s188 = scalar_lea.vmem %s1, %s187
      %p189 = pneg %p49
      %p190 = pneg %p46
      %p191 = pneg %p70
      %p192 = pneg %p67
      %p193 = pneg %p91
      %p194 = pneg %p88
      %p195 = pneg %p112
      %p196 = pneg %p109
      %p197 = pneg %p140
      %p198 = pneg %p137
      %s199 = smul.u32 2, %s20
      %p200 = scmp.lt.s32.totalorder %s21, 1
      %s201 = scalar_select %p200, %s21, 1
      %p202 = scmp.lt.s32.totalorder %s199, 1
      %s203 = scalar_select %p202, %s199, 1
      %s204 = smul.addr %s201, 2
      %s205 = sadd.s32 %s203, %s204
      %s206 = smul.addr %s205, 4
      %s207 = scalar_lea.vmem %s5, %s206
      %s208 = smul.u32 2, %s20
      %p209 = scmp.lt.s32.totalorder %s208, 1
      %s210 = scalar_select %p209, %s208, 1
      %s211 = smul.addr %s210, 2
      %s212 = scalar_lea.vmem %s1, %s211
      %s213 = smul.u32 2, %s20
      %s214 = smul.u32 2, %s20
      %p215 = scmp.lt.s32.totalorder %s21, 1
      %s216 = scalar_select %p215, %s21, 1
      %p217 = scmp.lt.s32.totalorder %s214, 1
      %s218 = scalar_select %p217, %s214, 1
      %s219 = smul.addr %s216, 2
      %s220 = sadd.s32 %s218, %s219
      %s221 = smul.addr %s220, 4
      %s222 = scalar_lea.vmem %s5, %s221
      %s223 = smul.u32 2, %s20
      %s225 = smul.u32 %s20, 256
      %s226 = sshra.s32 %s225, 7
      %s227 = sand.u32 %s225, 127
      %s228 = smul.u32 %s21, 5
      %s229 = sadd.s32 %s226, %s228
      %s230 = smul.addr %s229, 2
      %s231 = scalar_lea.vmem %s0, %s230
      %p233 = scmp.lt.u32.totalorder 8, 8
      %p234 = pneg %p233
      // Predicated region
      $region37: #{splitted_forward.1} parent=35 // pred_check
        _
      $region38: #{splitted_forward.1} parent=35 // pred_check_branch
        %236 = sbr.rel (%p233) target = $region40
      $region39: #{splitted_forward.1} parent=35 // pred_region
        %s251 = sand.u32 8, 7
        %p252 = scmp.eq.s32.totalorder %s251, 0
        // Predicated region
        $region52: #{splitted_forward.1} parent=39 // pred_check
          %p253 = pneg %p252
        $region53: #{splitted_forward.1} parent=39 // pred_check_branch
          %255 = sbr.rel (%p253) target = $region55
        $region54: #{splitted_forward.1} parent=39 // pred_region
          loop: start=0, step=1, limit=1
          $region56: #{splitted_forward.1} parent=54 // loop_pre_header
            _
          $region57: #{splitted_forward.1} parent=54 // loop_header
            %s257 = sphi 0, %s261
            %p258 = scmp.ge.s32.totalorder %s257, 1
            %s262 = sphi %s231, %s231
            %s263 = sphi [#allocation2], [#allocation2]
          $region58: #{splitted_forward.1} parent=54 // loop_header_branch
            %260 = sbr.rel (%p258) target = $region62
          $region59: #{splitted_forward.1} parent=54 // loop_body
            %v264 = vld [vmem:[%s262] sm:$0xff]
            %265 = vst [vmem:[%s263] sm:$0xff] %v264
          $region60: #{splitted_forward.1} parent=54 // loop_footer
            %s261 = sadd.s32 1, %s257
          $region61: #{splitted_forward.1} parent=54 // loop_footer_branch
            %256 = sbr.rel target = $region57
          $region62: #{splitted_forward.1} parent=54 // loop_exit
            _
        $region55: #{splitted_forward.1} parent=39 // pred_fallthru
          _
        %p266 = pneg %p252
        // Predicated region
        $region63: #{splitted_forward.1} parent=39 // pred_check
          _
        $region64: #{splitted_forward.1} parent=39 // pred_check_branch
          %268 = sbr.rel (%p252) target = $region66
        $region65: #{splitted_forward.1} parent=39 // pred_region
          %s269 = sand.u32 8, 7
        $region66: #{splitted_forward.1} parent=39 // pred_fallthru
          _
      $region40: #{splitted_forward.1} parent=35 // pred_fallthru
        _
      // Predicated region
      $region41: #{splitted_forward.1} parent=35 // pred_check
        %p237 = pneg %p233
      $region42: #{splitted_forward.1} parent=35 // pred_check_branch
        %239 = sbr.rel (%p237) target = $region44
      $region43: #{splitted_forward.1} parent=35 // pred_region
        %s240 = sshllo.u32 0, 8
        loop: start=0, step=1, limit=1
        $region45: #{splitted_forward.1} parent=43 // loop_pre_header
          _
        $region46: #{splitted_forward.1} parent=43 // loop_header
          %s242 = sphi 0, %s246
          %p243 = scmp.ge.s32.totalorder %s242, 1
          %s247 = sphi %s231, %s231
          %s248 = sphi [#allocation2], [#allocation2]
        $region47: #{splitted_forward.1} parent=43 // loop_header_branch
          %245 = sbr.rel (%p243) target = $region51
        $region48: #{splitted_forward.1} parent=43 // loop_body
          %v249 = vld [vmem:[%s247] sm:%s240]
          %250 = vst [vmem:[%s248] sm:%s240] %v249
        $region49: #{splitted_forward.1} parent=43 // loop_footer
          %s246 = sadd.s32 1, %s242
        $region50: #{splitted_forward.1} parent=43 // loop_footer_branch
          %241 = sbr.rel target = $region46
        $region51: #{splitted_forward.1} parent=43 // loop_exit
          _
      $region44: #{splitted_forward.1} parent=35 // pred_fallthru
        _
      // Predicated region
      $region67: #{splitted_forward.1} parent=35 // pred_check
        _
      $region68: #{splitted_forward.1} parent=35 // pred_check_branch
        %272 = sbr.rel (0) target = $region70
      $region69: #{splitted_forward.1} parent=35 // pred_region
        %273 = vsyncadd [#allocation4], 128
      $region70: #{splitted_forward.1} parent=35 // pred_fallthru
        _
      %s274 = smul.u32 2, 1
      %s275 = smul.u32 %s274, 4
      %s276 = sshll.u32 %s275, 4
      %277 = dma.done [#allocation4], %s276
      %v278 = vld [vmem:[#allocation2] sm:$0x3f]
      %v279 = vld [vmem:[%s212] sm:$0x5]
      %v282 = vunpack.c.l.s4 1983009808
      %v283 = vunpack.c.0.s8 %v282
      %v284 = vlaneseq
      %v285 = vshrl.u32 %v284, 7
      %v286 = vsub.s32 %v283, %v285
      %v287 = vrot.slane %v279, %v286
      %v288 = vcombine.high %v287, %v287
      %v290 = vpack.i.b16 %v287, %v287
      %v292 = vlaneseq
      %v293 = vshrl.u32 %v292, 7
      %v294 = vsub.s32 0, %v293
      %v295 = vrot.slane %v290, %v294
      %v297 = vpack.i.b16 %v288, %v288
      %v299 = vlaneseq
      %v300 = vshrl.u32 %v299, 7
      %v301 = vsub.s32 0, %v300
      %v302 = vrot.slane %v297, %v301
      %v305 = vcombine.low %v295, %v302
      %v307 = vunpack.c.l.s4 1983009808
      %v308 = vunpack.c.0.s8 %v307
      %v309 = vlaneseq
      %v310 = vshrl.u32 %v309, 7
      %v311 = vsub.s32 %v308, %v310
      %v312 = vrot.slane %v305, %v311
      %313 = vrot.lane.b32.xlu0 %v312, 127
      %v314 = vpop.permute.xlu0 %313
      %v315 = vrot.slane %v314, 6
      %vm316 = vcmask 1039360
      %v317 = vsel %vm316, %v315, %v314
      %v319 = vmul.bf16 %v278, %v317
      %v321 = vcombine.high %v319, %v319
      %v323 = vunpack.c.l.s4 1983009808
      %v324 = vunpack.c.0.s8 %v323
      %v325 = vlaneseq
      %v326 = vshrl.u32 %v325, 7
      %v327 = vsub.s32 %v324, %v326
      %v328 = vrot.slane %v319, %v327
      %v330 = vunpack.c.l.s4 1983009808
      %v331 = vunpack.c.0.s8 %v330
      %v332 = vlaneseq
      %v333 = vshrl.u32 %v332, 7
      %v334 = vsub.s32 %v331, %v333
      %v335 = vrot.slane %v321, %v334
      %336 = vrot.lane.b32.xlu0 %v328, 1
      %v337 = vpop.permute.xlu0 %336
      %338 = vrot.lane.b32.xlu0 %v335, 1
      %v339 = vpop.permute.xlu0 %338
      %v340 = vrot.slane %v337, 4
      %v341 = vrot.slane %v339, 4
      %vm342 = vcmask 1043456
      %v343 = vsel %vm342, %v340, %v341
      %vm344 = vcmask 7168
      %v345 = vsel %vm344, %v337, %v343
      %347 = vst [vmem:[#allocation3] sm:$0x33] %v345
      %v348 = vld [vmem:[#allocation2 + $0x2] sm:$0xf]
      %v350 = vcombine.low %v348, %v348
      %v352 = vunpack.c.l.s4 1983009808
      %v353 = vunpack.c.0.s8 %v352
      %v354 = vlaneseq
      %v355 = vshrl.u32 %v354, 7
      %v356 = vsub.s32 %v353, %v355
      %v357 = vrot.slane %v350, %v356
      %359 = vst [vmem:[#allocation3] sm:$0xcc] %v357
      %v360 = vld [vmem:[#allocation2 + $0x2] sm:$0x3f]
      %v361 = vld [vmem:[%s212] sm:$0xa]
      %v364 = vunpack.c.l.s4 1983009808
      %v365 = vunpack.c.0.s8 %v364
      %v366 = vlaneseq
      %v367 = vshrl.u32 %v366, 7
      %v368 = vsub.s32 %v365, %v367
      %v369 = vrot.slane %v361, %v368
      %v370 = vcombine.high %v369, %v369
      %v372 = vpack.i.b16 %v369, %v369
      %v374 = vlaneseq
      %v375 = vshrl.u32 %v374, 7
      %v376 = vsub.s32 1, %v375
      %v377 = vrot.slane %v372, %v376
      %v379 = vpack.i.b16 %v370, %v370
      %v381 = vlaneseq
      %v382 = vshrl.u32 %v381, 7
      %v383 = vsub.s32 1, %v382
      %v384 = vrot.slane %v379, %v383
      %v387 = vcombine.low %v377, %v384
      %v389 = vunpack.c.l.s4 1983009808
      %v390 = vunpack.c.0.s8 %v389
      %v391 = vlaneseq
      %v392 = vshrl.u32 %v391, 7
      %v393 = vsub.s32 %v390, %v392
      %v394 = vrot.slane %v387, %v393
      %395 = vrot.lane.b32.xlu0 %v394, 1
      %v396 = vpop.permute.xlu0 %395
      %v397 = vrot.slane %v396, 6
      %v398 = vsel %vm344, %v397, %v396
      %v400 = vmul.bf16 %v360, %v398
      %v402 = vcombine.high %v400, %v400
      %v404 = vunpack.c.l.s4 1983009808
      %v405 = vunpack.c.0.s8 %v404
      %v406 = vlaneseq
      %v407 = vshrl.u32 %v406, 7
      %v408 = vsub.s32 %v405, %v407
      %v409 = vrot.slane %v400, %v408
      %v411 = vunpack.c.l.s4 1983009808
      %v412 = vunpack.c.0.s8 %v411
      %v413 = vlaneseq
      %v414 = vshrl.u32 %v413, 7
      %v415 = vsub.s32 %v412, %v414
      %v416 = vrot.slane %v402, %v415
      %417 = vrot.lane.b32.xlu0 %v409, 127
      %v418 = vpop.permute.xlu0 %417
      %419 = vrot.lane.b32.xlu0 %v416, 127
      %v420 = vpop.permute.xlu0 %419
      %v421 = vrot.slane %v418, 4
      %v422 = vrot.slane %v420, 4
      %v423 = vsel %vm342, %v421, %v422
      %v424 = vsel %vm316, %v418, %v423
      %426 = vst [vmem:[#allocation3 + $0x8] sm:$0x33] %v424
      %v427 = vld [vmem:[#allocation2 + $0x2] sm:$0x3f]
      %v428 = vld [vmem:[%s212] sm:$0x5]
      %v431 = vunpack.c.l.s4 1983009808
      %v432 = vunpack.c.0.s8 %v431
      %v433 = vlaneseq
      %v434 = vshrl.u32 %v433, 7
      %v435 = vsub.s32 %v432, %v434
      %v436 = vrot.slane %v428, %v435
      %v437 = vcombine.high %v436, %v436
      %v439 = vpack.i.b16 %v436, %v436
      %v441 = vlaneseq
      %v442 = vshrl.u32 %v441, 7
      %v443 = vsub.s32 0, %v442
      %v444 = vrot.slane %v439, %v443
      %v446 = vpack.i.b16 %v437, %v437
      %v448 = vlaneseq
      %v449 = vshrl.u32 %v448, 7
      %v450 = vsub.s32 0, %v449
      %v451 = vrot.slane %v446, %v450
      %v454 = vcombine.low %v444, %v451
      %v456 = vunpack.c.l.s4 1983009808
      %v457 = vunpack.c.0.s8 %v456
      %v458 = vlaneseq
      %v459 = vshrl.u32 %v458, 7
      %v460 = vsub.s32 %v457, %v459
      %v461 = vrot.slane %v454, %v460
      %462 = vrot.lane.b32.xlu0 %v461, 15
      %v463 = vpop.permute.xlu0 %462
      %v464 = vrot.slane %v463, 6
      %vm465 = vcmask 121856
      %v466 = vsel %vm465, %v464, %v463
      %v468 = vmul.bf16 %v427, %v466
      %v470 = vcombine.low %v468, %v468
      %v472 = vunpack.c.l.s4 1983009808
      %v473 = vunpack.c.0.s8 %v472
      %v474 = vlaneseq
      %v475 = vshrl.u32 %v474, 7
      %v476 = vsub.s32 %v473, %v475
      %v477 = vrot.slane %v470, %v476
      %v479 = vunpack.c.l.s4 1983009808
      %v480 = vunpack.c.0.s8 %v479
      %v481 = vlaneseq
      %v482 = vshrl.u32 %v481, 7
      %v483 = vsub.s32 %v480, %v482
      %v484 = vrot.slane %v468, %v483
      %485 = vrot.lane.b32.xlu0 %v477, 113
      %v486 = vpop.permute.xlu0 %485
      %487 = vrot.lane.b32.xlu0 %v484, 113
      %v488 = vpop.permute.xlu0 %487
      %v489 = vrot.slane %v486, 4
      %v490 = vrot.slane %v488, 4
      %v491 = vsel %vm342, %v489, %v490
      %vm492 = vcmask 924672
      %v493 = vsel %vm492, %v486, %v491
      %495 = vst [vmem:[#allocation3 + $0x8] sm:$0xcc] %v493
      %v496 = vld [vmem:[#allocation2 + $0x2] sm:$0x3f]
      %v498 = vcombine.high %v496, %v496
      %v500 = vunpack.c.l.s4 1983009808
      %v501 = vunpack.c.0.s8 %v500
      %v502 = vlaneseq
      %v503 = vshrl.u32 %v502, 7
      %v504 = vsub.s32 %v501, %v503
      %v505 = vrot.slane %v496, %v504
      %v507 = vunpack.c.l.s4 1983009808
      %v508 = vunpack.c.0.s8 %v507
      %v509 = vlaneseq
      %v510 = vshrl.u32 %v509, 7
      %v511 = vsub.s32 %v508, %v510
      %v512 = vrot.slane %v498, %v511
      %513 = vrot.lane.b32.xlu0 %v505, 112
      %v514 = vpop.permute.xlu0 %513
      %515 = vrot.lane.b32.xlu0 %v512, 112
      %v516 = vpop.permute.xlu0 %515
      %v517 = vrot.slane %v514, 4
      %v518 = vrot.slane %v516, 4
      %v519 = vsel %vm342, %v517, %v518
      %vm520 = vcmask 916480
      %v521 = vsel %vm520, %v514, %v519
      %523 = vst [vmem:[#allocation3 + $0x10] sm:$0x33] %v521
      %v524 = vld [vmem:[#allocation2 + $0x2] sm:$0x3f]
      %v525 = vld [vmem:[%s212] sm:$0xa]
      %v528 = vunpack.c.l.s4 1983009808
      %v529 = vunpack.c.0.s8 %v528
      %v530 = vlaneseq
      %v531 = vshrl.u32 %v530, 7
      %v532 = vsub.s32 %v529, %v531
      %v533 = vrot.slane %v525, %v532
      %v534 = vcombine.high %v533, %v533
      %v536 = vpack.i.b16 %v533, %v533
      %v538 = vlaneseq
      %v539 = vshrl.u32 %v538, 7
      %v540 = vsub.s32 1, %v539
      %v541 = vrot.slane %v536, %v540
      %v543 = vpack.i.b16 %v534, %v534
      %v545 = vlaneseq
      %v546 = vshrl.u32 %v545, 7
      %v547 = vsub.s32 1, %v546
      %v548 = vrot.slane %v543, %v547
      %v551 = vcombine.low %v541, %v548
      %v553 = vunpack.c.l.s4 1983009808
      %v554 = vunpack.c.0.s8 %v553
      %v555 = vlaneseq
      %v556 = vshrl.u32 %v555, 7
      %v557 = vsub.s32 %v554, %v556
      %v558 = vrot.slane %v551, %v557
      %559 = vrot.lane.b32.xlu0 %v558, 17
      %v560 = vpop.permute.xlu0 %559
      %v561 = vrot.slane %v560, 6
      %vm562 = vcmask 138240
      %v563 = vsel %vm562, %v561, %v560
      %v565 = vmul.bf16 %v524, %v563
      %v567 = vcombine.low %v565, %v565
      %v569 = vunpack.c.l.s4 1983009808
      %v570 = vunpack.c.0.s8 %v569
      %v571 = vlaneseq
      %v572 = vshrl.u32 %v571, 7
      %v573 = vsub.s32 %v570, %v572
      %v574 = vrot.slane %v567, %v573
      %v576 = vunpack.c.l.s4 1983009808
      %v577 = vunpack.c.0.s8 %v576
      %v578 = vlaneseq
      %v579 = vshrl.u32 %v578, 7
      %v580 = vsub.s32 %v577, %v579
      %v581 = vrot.slane %v565, %v580
      %582 = vrot.lane.b32.xlu0 %v574, 111
      %v583 = vpop.permute.xlu0 %582
      %584 = vrot.lane.b32.xlu0 %v581, 111
      %v585 = vpop.permute.xlu0 %584
      %v586 = vrot.slane %v583, 4
      %v587 = vrot.slane %v585, 4
      %v588 = vsel %vm342, %v586, %v587
      %vm589 = vcmask 908288
      %v590 = vsel %vm589, %v583, %v588
      %592 = vst [vmem:[#allocation3 + $0x10] sm:$0xcc] %v590
      %v593 = vld [vmem:[#allocation2 + $0x2] sm:$0x3f]
      %v594 = vld [vmem:[%s212] sm:$0x5]
      %v597 = vunpack.c.l.s4 1983009808
      %v598 = vunpack.c.0.s8 %v597
      %v599 = vlaneseq
      %v600 = vshrl.u32 %v599, 7
      %v601 = vsub.s32 %v598, %v600
      %v602 = vrot.slane %v594, %v601
      %v603 = vcombine.high %v602, %v602
      %v605 = vpack.i.b16 %v602, %v602
      %v607 = vlaneseq
      %v608 = vshrl.u32 %v607, 7
      %v609 = vsub.s32 0, %v608
      %v610 = vrot.slane %v605, %v609
      %v612 = vpack.i.b16 %v603, %v603
      %v614 = vlaneseq
      %v615 = vshrl.u32 %v614, 7
      %v616 = vsub.s32 0, %v615
      %v617 = vrot.slane %v612, %v616
      %v620 = vcombine.low %v610, %v617
      %v622 = vunpack.c.l.s4 1983009808
      %v623 = vunpack.c.0.s8 %v622
      %v624 = vlaneseq
      %v625 = vshrl.u32 %v624, 7
      %v626 = vsub.s32 %v623, %v625
      %v627 = vrot.slane %v620, %v626
      %628 = vrot.lane.b32.xlu0 %v627, 31
      %v629 = vpop.permute.xlu0 %628
      %v630 = vrot.slane %v629, 6
      %vm631 = vcmask 252928
      %v632 = vsel %vm631, %v630, %v629
      %v634 = vmul.bf16 %v593, %v632
      %v636 = vcombine.high %v634, %v634
      %v638 = vunpack.c.l.s4 1983009808
      %v639 = vunpack.c.0.s8 %v638
      %v640 = vlaneseq
      %v641 = vshrl.u32 %v640, 7
      %v642 = vsub.s32 %v639, %v641
      %v643 = vrot.slane %v634, %v642
      %v645 = vunpack.c.l.s4 1983009808
      %v646 = vunpack.c.0.s8 %v645
      %v647 = vlaneseq
      %v648 = vshrl.u32 %v647, 7
      %v649 = vsub.s32 %v646, %v648
      %v650 = vrot.slane %v636, %v649
      %651 = vrot.lane.b32.xlu0 %v643, 97
      %v652 = vpop.permute.xlu0 %651
      %653 = vrot.lane.b32.xlu0 %v650, 97
      %v654 = vpop.permute.xlu0 %653
      %v655 = vrot.slane %v652, 4
      %v656 = vrot.slane %v654, 4
      %v657 = vsel %vm342, %v655, %v656
      %vm658 = vcmask 793600
      %v659 = vsel %vm658, %v652, %v657
      %661 = vst [vmem:[#allocation3 + $0x18] sm:$0x33] %v659
      %v662 = vld [vmem:[#allocation2 + $0x2] sm:$0x3f]
      %v664 = vcombine.low %v662, %v662
      %v666 = vunpack.c.l.s4 1983009808
      %v667 = vunpack.c.0.s8 %v666
      %v668 = vlaneseq
      %v669 = vshrl.u32 %v668, 7
      %v670 = vsub.s32 %v667, %v669
      %v671 = vrot.slane %v664, %v670
      %v673 = vunpack.c.l.s4 1983009808
      %v674 = vunpack.c.0.s8 %v673
      %v675 = vlaneseq
      %v676 = vshrl.u32 %v675, 7
      %v677 = vsub.s32 %v674, %v676
      %v678 = vrot.slane %v662, %v677
      %679 = vrot.lane.b32.xlu0 %v671, 96
      %v680 = vpop.permute.xlu0 %679
      %681 = vrot.lane.b32.xlu0 %v678, 96
      %v682 = vpop.permute.xlu0 %681
      %v683 = vrot.slane %v680, 4
      %v684 = vrot.slane %v682, 4
      %v685 = vsel %vm342, %v683, %v684
      %vm686 = vcmask 785408
      %v687 = vsel %vm686, %v680, %v685
      %689 = vst [vmem:[#allocation3 + $0x18] sm:$0xcc] %v687
      %v690 = vld [vmem:[#allocation2 + $0x2] sm:$0x3f]
      %v691 = vld [vmem:[%s212] sm:$0xa]
      %v694 = vunpack.c.l.s4 1983009808
      %v695 = vunpack.c.0.s8 %v694
      %v696 = vlaneseq
      %v697 = vshrl.u32 %v696, 7
      %v698 = vsub.s32 %v695, %v697
      %v699 = vrot.slane %v691, %v698
      %v700 = vcombine.high %v699, %v699
      %v702 = vpack.i.b16 %v699, %v699
      %v704 = vlaneseq
      %v705 = vshrl.u32 %v704, 7
      %v706 = vsub.s32 1, %v705
      %v707 = vrot.slane %v702, %v706
      %v709 = vpack.i.b16 %v700, %v700
      %v711 = vlaneseq
      %v712 = vshrl.u32 %v711, 7
      %v713 = vsub.s32 1, %v712
      %v714 = vrot.slane %v709, %v713
      %v717 = vcombine.low %v707, %v714
      %v719 = vunpack.c.l.s4 1983009808
      %v720 = vunpack.c.0.s8 %v719
      %v721 = vlaneseq
      %v722 = vshrl.u32 %v721, 7
      %v723 = vsub.s32 %v720, %v722
      %v724 = vrot.slane %v717, %v723
      %725 = vrot.lane.b32.xlu0 %v724, 33
      %v726 = vpop.permute.xlu0 %725
      %v727 = vrot.slane %v726, 6
      %vm728 = vcmask 269312
      %v729 = vsel %vm728, %v727, %v726
      %v731 = vmul.bf16 %v690, %v729
      %v733 = vcombine.high %v731, %v731
      %v735 = vunpack.c.l.s4 1983009808
      %v736 = vunpack.c.0.s8 %v735
      %v737 = vlaneseq
      %v738 = vshrl.u32 %v737, 7
      %v739 = vsub.s32 %v736, %v738
      %v740 = vrot.slane %v731, %v739
      %v742 = vunpack.c.l.s4 1983009808
      %v743 = vunpack.c.0.s8 %v742
      %v744 = vlaneseq
      %v745 = vshrl.u32 %v744, 7
      %v746 = vsub.s32 %v743, %v745
      %v747 = vrot.slane %v733, %v746
      %748 = vrot.lane.b32.xlu0 %v740, 95
      %v749 = vpop.permute.xlu0 %748
      %750 = vrot.lane.b32.xlu0 %v747, 95
      %v751 = vpop.permute.xlu0 %750
      %v752 = vrot.slane %v749, 4
      %v753 = vrot.slane %v751, 4
      %v754 = vsel %vm342, %v752, %v753
      %vm755 = vcmask 777216
      %v756 = vsel %vm755, %v749, %v754
      %758 = vst [vmem:[#allocation3 + $0x20] sm:$0x33] %v756
      %v759 = vld [vmem:[%s2] sm:$0xf]
      %v760 = vld [vmem:[%s2 + $0x4] sm:$0xf]
      %v761 = vld [vmem:[%s2 + $0x8] sm:$0xf]
      %v762 = vld [vmem:[#allocation3] sm:$0xff]
      %v763 = vld [vmem:[#allocation3 + $0x8] sm:$0xff]
      %v764 = vld [vmem:[#allocation3 + $0x10] sm:$0xff]
      %v765 = vld [vmem:[#allocation3 + $0x18] sm:$0xff]
      %v766 = vld [vmem:[#allocation3 + $0x20] sm:$0x33]
      %v770 = vunpack.c.l.b16 %v759
      %v771 = vunpack.c.l.b16 %v760
      %v772 = vunpack.c.l.b16 %v761
      %v773 = vpack.c.b16 %v771, %v770
      %v774 = vpack.c.b16 %v772, %v772
      %v780 = vunpack.c.l.b16 %v762
      %v781 = vunpack.c.h.b16 %v762
      %v782 = vunpack.c.l.b16 %v763
      %v783 = vunpack.c.h.b16 %v763
      %v784 = vunpack.c.l.b16 %v764
      %v785 = vunpack.c.h.b16 %v764
      %v786 = vunpack.c.l.b16 %v765
      %v787 = vunpack.c.h.b16 %v765
      %v788 = vunpack.c.l.b16 %v766
      %v789 = vunpack.c.h.b16 %v766
      %v790 = vpack.c.b16 %v782, %v780
      %v791 = vpack.c.b16 %v783, %v781
      %v792 = vpack.c.b16 %v786, %v784
      %v793 = vpack.c.b16 %v787, %v785
      %v794 = vpack.c.b16 %v788, %v788
      %v795 = vpack.c.b16 %v789, %v789
      %vm800 = vcmask 293888
      %v802 = vsel %vm800, %v773, 0
      %v805 = vsel %vm800, %v774, 0
      %vm807 = vcmask 1041408
      %v809 = vsel %vm807, %v794, 0
      %v812 = vsel %vm807, %v795, 0
      %814 = vmatprep.subr.bf16.mxu0 %v791
      %815 = vmatpush1.bf16.msra.mxu0 %v790
      %816 = vmatprep.subr.bf16.mxu0 %v793
      %817 = vmatpush1.bf16.msra.mxu0 %v792
      %818 = vmatprep.subr.bf16.mxu0 %v812
      %819 = vmatpush1.bf16.msra.mxu0 %v809
      %820 = vmatprep.subr.bf16.mxu0 0
      %821 = vmatpush1.bf16.msra.mxu0 0
      %822 = vmatprep.subr.bf16.mxu0 0
      %823 = vmatpush1.bf16.msra.mxu0 0
      %824 = vmatprep.subr.bf16.mxu0 0
      %825 = vmatpush1.bf16.msra.mxu0 0
      %826 = vmatprep.subr.bf16.mxu0 0
      %827 = vmatpush1.bf16.msra.mxu0 0
      %828 = vmatprep.subr.bf16.mxu0 0
      %829 = vmatpush1.bf16.msra.mxu0 0
      %830 = vmatprep.subr.bf16.mxu0 0
      %831 = vmatpush1.bf16.msra.mxu0 0
      %832 = vmatprep.subr.bf16.mxu0 0
      %833 = vmatpush1.bf16.msra.mxu0 0
      %834 = vmatprep.subr.bf16.mxu0 0
      %835 = vmatpush1.bf16.msra.mxu0 0
      %836 = vmatprep.subr.bf16.mxu0 0
      %837 = vmatpush1.bf16.msra.mxu0 0
      %838 = vmatprep.subr.bf16.mxu0 0
      %839 = vmatpush1.bf16.msra.mxu0 0
      %840 = vmatprep.subr.bf16.mxu0 0
      %841 = vmatpush1.bf16.msra.mxu0 0
      %842 = vmatprep.subr.bf16.mxu0 0
      %843 = vmatpush1.bf16.msra.mxu0 0
      %844 = vmatprep.subr.bf16.mxu0 0
      %845 = vmatpush1.bf16.msra.mxu0 0
      %846 = vmatprep.mubr.bf16.mxu0 0
      %847 = vmatmul.mubr.bf16.gmra.mrb[0].mxu0 %v802
      %v848 = vpop.f32.mrb[0].mxu0
      %v849 = vadd.f32 0.0, %v848
      %v850 = vpop.f32.mrb[0].mxu0
      %v851 = vadd.f32 0.0, %v850
      %v852 = vpop.f32.mrb[0].mxu0
      %v853 = vadd.f32 0.0, %v852
      %v854 = vpop.f32.mrb[0].mxu0
      %v855 = vadd.f32 0.0, %v854
      %856 = vmatprep.mubr.bf16.mxu0 0
      %857 = vmatmul.mubr.bf16.gmra.mrb[0].mxu0 %v805
      %v858 = vpop.f32.mrb[0].mxu0
      %v859 = vadd.f32 0.0, %v858
      %v860 = vpop.f32.mrb[0].mxu0
      %v861 = vadd.f32 0.0, %v860
      %v862 = vpop.f32.mrb[0].mxu0
      %v863 = vpop.f32.mrb[0].mxu0
      %864 = vdwg.mxu0
      %v865 = vld [vmem:[%s3] sm:$0xff]
      %v866 = vld [vmem:[%s3 + $0x8] sm:$0xff]
      %v867 = vld [vmem:[%s3 + $0x10] sm:$0xff]
      %869 = vset.pattern.permute.xlu0 0
      %870 = vperm.xlu0 %869, %v865
      %v871 = vpop.permute.xlu0 %870
      %874 = vset.pattern.permute.xlu0 0
      %875 = vperm.xlu0 %874, %v866
      %v876 = vpop.permute.xlu0 %875
      %879 = vset.pattern.permute.xlu0 0
      %880 = vperm.xlu0 %879, %v867
      %v881 = vpop.permute.xlu0 %880
      %v883 = vmul.f32 %v849, %v871
      %v884 = vmul.f32 %v851, %v871
      %v885 = vmul.f32 %v853, %v876
      %v886 = vmul.f32 %v855, %v876
      %v887 = vmul.f32 %v859, %v881
      %v888 = vmul.f32 %v861, %v881
      %v889 = vld [vmem:[%s4] sm:$0xff]
      %v890 = vld [vmem:[%s4 + $0x8] sm:$0xff]
      %v891 = vld [vmem:[%s4 + $0x10] sm:$0xff]
      %893 = vset.pattern.permute.xlu0 0
      %894 = vperm.xlu0 %893, %v889
      %v895 = vpop.permute.xlu0 %894
      %898 = vset.pattern.permute.xlu0 0
      %899 = vperm.xlu0 %898, %v890
      %v900 = vpop.permute.xlu0 %899
      %903 = vset.pattern.permute.xlu0 0
      %904 = vperm.xlu0 %903, %v891
      %v905 = vpop.permute.xlu0 %904
      %v907 = vadd.f32 %v883, %v895
      %v908 = vadd.f32 %v884, %v895
      %v909 = vadd.f32 %v885, %v900
      %v910 = vadd.f32 %v886, %v900
      %v911 = vadd.f32 %v887, %v905
      %v912 = vadd.f32 %v888, %v905
      %v913 = vmax.f32 %v907, 0.0
      %v914 = vmax.f32 %v908, 0.0
      %v915 = vmax.f32 %v909, 0.0
      %v916 = vmax.f32 %v910, 0.0
      %v917 = vmax.f32 %v911, 0.0
      %v918 = vmax.f32 %v912, 0.0
      %v919 = vadd.f32 %v913, %v915
      %v920 = vadd.f32 %v914, %v916
      %v921 = vadd.f32 %v919, %v917
      %v922 = vadd.f32 %v920, %v918
      %v925 = vcombine.low %v921, %v922
      %927 = vst [vmem:[%s222] sm:$0xff] %v925
      %s928 = smul.u32 2, %s20
      %p929 = scmp.lt.s32.totalorder %s21, 1
      %s930 = scalar_select %p929, %s21, 1
      %p931 = scmp.lt.s32.totalorder %s928, 1
      %s932 = scalar_select %p931, %s928, 1
      %s933 = smul.addr %s930, 2
      %s934 = sadd.s32 %s932, %s933
      %s935 = smul.addr %s934, 4
      %s936 = scalar_lea.vmem %s5, %s935
      // Predicated region
      $region71: #{splitted_forward.1} parent=35 // pred_check
        %p937 = pneg %p137
      $region72: #{splitted_forward.1} parent=35 // pred_check_branch
        %939 = sbr.rel (%p937) target = $region74
      $region73: #{splitted_forward.1} parent=35 // pred_region
        %s940 = smul.u32 2, %s20
      $region74: #{splitted_forward.1} parent=35 // pred_fallthru
        _
    $region36: #{splitted_forward.1} parent=5 // pred_fallthru
      _
    %p941 = scmp.le.s32.totalorder 2, %s11
    // Predicated region
    $region75: #{splitted_forward.1} parent=5 // pred_check
      %p942 = pneg %p941
    $region76: #{splitted_forward.1} parent=5 // pred_check_branch
      %944 = sbr.rel (%p942) target = $region78
    $region77: #{splitted_forward.1} parent=5 // pred_region
      %s945 = ssub.s32 %s11, 2
      // Predicated region
      $region79: #{splitted_forward.1} parent=77 // pred_check
        %p946 = pneg %p143
      $region80: #{splitted_forward.1} parent=77 // pred_check_branch
        %948 = sbr.rel (%p946) target = $region82
      $region81: #{splitted_forward.1} parent=77 // pred_region
        %s949 = smul.u32 2, %s22
        %p950 = scmp.lt.s32.totalorder %s23, 1
        %s951 = scalar_select %p950, %s23, 1
        %p952 = scmp.lt.s32.totalorder %s949, 1
        %s953 = scalar_select %p952, %s949, 1
        %s954 = smul.addr %s951, 2
        %s955 = sadd.s32 %s953, %s954
        %s956 = smul.addr %s955, 4
        %s957 = scalar_lea.vmem %s5, %s956
      $region82: #{splitted_forward.1} parent=77 // pred_fallthru
        _
    $region78: #{splitted_forward.1} parent=5 // pred_fallthru
      _
  $region6: #{splitted_forward.1} parent=0 // loop_footer
    %s15 = sadd.s32 1, %s11
  $region7: #{splitted_forward.1} parent=0 // loop_footer_branch
    %10 = sbr.rel target = $region3
  $region8: #{splitted_forward.1} parent=0 // loop_exit
    _
  %958 = vsyncmov [#allocation4]
  %s959 = vpop.sfrf %958
  %p960 = scmp.eq.s32.totalorder %s959, 0
  %p961 = pneg %p960
  %963 = shalt.err (%p961)

</llo_original>
